<compile_context>
chip_gen: v6e
topology: v6e:2x2x1
jax: 0.10.0
libtpu: 0.0.40
codegen_flags: <defaults>
</compile_context>

<pallas_src>
import jax
import jax.numpy as jnp
from jax.experimental import pallas as pl
from jax.experimental.pallas import tpu as pltpu


def _round_up(x, m):
    return ((x + m - 1) // m) * m


def _make_treecrf_kernel(labels_per_tile, dp, rows_per_tile, use_mask):
    def kernel(*refs):
        if use_mask:
            h_ref, ct_ref, u_ref, mrow_ref, mcol_ref, out_ref = refs
        else:
            h_ref, ct_ref, u_ref, out_ref = refs

        h = h_ref[0]      # (TI, Dp)       compute dtype (bf16 or f32)
        ct = ct_ref[0]    # (Dp, Lj)       compute dtype (pre-transposed child)
        u = u_ref[0]      # (Dp, LT*Dp)    compute dtype (label-stacked U_aug)

        # One wide MXU matmul covering every label in this tile (N = LT*Dp).
        tmp = jnp.dot(h, u, preferred_element_type=jnp.float32)   # (TI, LT*Dp)
        tmp = tmp.astype(h.dtype)

        lj = ct.shape[-1]
        row = (jax.lax.broadcasted_iota(jnp.int32, (rows_per_tile, lj), 0)
               + pl.program_id(2) * rows_per_tile)
        col = jax.lax.broadcasted_iota(jnp.int32, (rows_per_tile, lj), 1)
        is_diag = row == col

        if use_mask:
            # (TI,1) * (1,Lj) -> (TI,Lj); hoisted out of the label loop.
            m = mrow_ref[0] * mcol_ref[0]

        neg_inf = jnp.float32(-jnp.inf)
        for l in range(labels_per_tile):       # static unroll over labels
            tl = tmp[:, l * dp:(l + 1) * dp]   # lane-aligned static slice
            e = jnp.dot(tl, ct, preferred_element_type=jnp.float32)  # (TI, Lj)
            if use_mask:
                e = e * m
            # Fused mask + (-inf) diagonal.  Equivalent to `energy*mask + diag(-inf)`
            # because every non-diagonal entry is kept and every diagonal entry
            # (finite before the add) becomes exactly -inf.
            out_ref[0, l] = jnp.where(is_diag, neg_inf, e)

    return kernel


def treecrf_forward(input_h, input_c, W_d, W_e, U, bias, mask=None, *,
                    use_bf16=True):
    """Pallas TreeCRF forward.

    input_h, input_c : [batch, length, input_size] float32
    W_d, W_e         : [num_labels, input_size]
    U                : [num_labels, input_size, input_size]
    bias             : [num_labels]
    mask             : [batch, length] or None
    returns          : [batch, num_labels, length, length] float32
    """
    f32 = jnp.float32
    batch, length, dim = input_h.shape
    num_labels = U.shape[0]

    compute_dtype = jnp.bfloat16 if use_bf16 else jnp.float32
    itemsize = 2 if use_bf16 else 4

    # ---- padded / tiled sizes ------------------------------------------------
    dp = _round_up(dim + 1, 128)          # augmented, lane-aligned feature dim
    lj = _round_up(length, 128)           # lane-dense output columns
    li = _round_up(length, 8)             # sublane-aligned output rows
    ti = li if li <= 512 else 256         # row tile
    li = _round_up(li, ti)

    # Labels per tile: bound both the stacked-U block and the output block.
    lt = max(1, min(num_labels, (8 << 20) // (dp * dp * itemsize)))
    lt = max(1, min(lt, (8 << 20) // (ti * lj * 4)))
    nl_pad = _round_up(num_labels, lt)
    n_label_tiles = nl_pad // lt

    # ---- wrapper-side glue: augmentation, padding, label stacking -----------
    # h_aug = [h | 1 | 0...],   c_aug = [c | 1 | 0...]
    h_aug = jnp.zeros((batch, li, dp), f32)
    h_aug = h_aug.at[:, :length, :dim].set(input_h.astype(f32))
    h_aug = h_aug.at[:, :length, dim].set(1.0)
    h_aug = h_aug.astype(compute_dtype)

    c_aug = jnp.zeros((batch, lj, dp), f32)
    c_aug = c_aug.at[:, :length, :dim].set(input_c.astype(f32))
    c_aug = c_aug.at[:, :length, dim].set(1.0)
    c_t = jnp.swapaxes(c_aug, 1, 2).astype(compute_dtype)      # (batch, Dp, Lj)

    # U_aug[l] = [[U[l], W_d[l]^T], [W_e[l], bias[l]]]  padded to (Dp, Dp)
    u_aug = jnp.zeros((nl_pad, dp, dp), f32)
    u_aug = u_aug.at[:num_labels, :dim, :dim].set(U.astype(f32))
    u_aug = u_aug.at[:num_labels, :dim, dim].set(W_d.astype(f32))
    u_aug = u_aug.at[:num_labels, dim, :dim].set(W_e.astype(f32))
    u_aug = u_aug.at[:num_labels, dim, dim].set(bias.astype(f32))
    # Stack labels along the last (lane) dim per label tile: (NLT, Dp, LT*Dp).
    u_wide = jnp.swapaxes(u_aug.reshape(n_label_tiles, lt, dp, dp), 1, 2)
    u_wide = u_wide.reshape(n_label_tiles, dp, lt * dp).astype(compute_dtype)

    use_mask = mask is not None
    args = [h_aug, c_t, u_wide]
    in_specs = [
        pl.BlockSpec((1, ti, dp), lambda b, t, i: (b, i, 0)),       # h_aug
        pl.BlockSpec((1, dp, lj), lambda b, t, i: (b, 0, 0)),       # c (pre-T)
        pl.BlockSpec((1, dp, lt * dp), lambda b, t, i: (t, 0, 0)),  # U stacked
    ]
    if use_mask:
        m = mask.astype(f32)
        mrow = jnp.zeros((batch, li, 1), f32).at[:, :length, 0].set(m)
        mcol = jnp.zeros((batch, 1, lj), f32).at[:, 0, :length].set(m)
        args += [mrow, mcol]
        in_specs += [
            pl.BlockSpec((1, ti, 1), lambda b, t, i: (b, i, 0)),    # row mask
            pl.BlockSpec((1, 1, lj), lambda b, t, i: (b, 0, 0)),    # col mask
        ]

    grid = (batch, n_label_tiles, li // ti)

    # Explicit VMEM budget from actual block sizes (double-buffered) + headroom,
    # capped at 60 MiB so the same config also fits v7x's 64 MiB physical VMEM.
    block_bytes = (ti * dp + dp * lj + dp * lt * dp) * itemsize + lt * ti * lj * 4
    if use_mask:
        block_bytes += (ti + lj) * 4
    vmem_limit = int(min(60 << 20, max(16 << 20, 2 * block_bytes + (4 << 20))))

    kernel = _make_treecrf_kernel(lt, dp, ti, use_mask)

    out = pl.pallas_call(
        kernel,
        out_shape=jax.ShapeDtypeStruct((batch, nl_pad, li, lj), f32),
        grid_spec=pltpu.PrefetchScalarGridSpec(
            num_scalar_prefetch=0,
            grid=grid,
            in_specs=in_specs,
            out_specs=pl.BlockSpec((1, lt, ti, lj),
                                   lambda b, t, i: (b, t, i, 0)),
        ),
        compiler_params=pltpu.CompilerParams(
            dimension_semantics=("parallel", "parallel", "parallel"),
            vmem_limit_bytes=vmem_limit),
    )(*args)

    # Slice off label / row / column padding.
    return out[:, :num_labels, :length, :length]


def treecrf_reference(input_h, input_c, W_d, W_e, U, bias, mask=None):
    """Pure-JAX reference mirroring the PyTorch forward exactly."""
    batch, length, _ = input_h.shape
    num_labels = U.shape[0]
    out_d = jnp.einsum('nd,bid->bni', W_d, input_h)[:, :, :, None]
    out_e = jnp.einsum('nd,bjd->bnj', W_e, input_c)[:, :, None, :]
    biaff = jnp.einsum('bid,ndk,bjk->bnij', input_h, U, input_c)
    out = biaff + out_d + out_e + bias.reshape(1, num_labels, 1, 1)
    if mask is not None:
        out = out * mask[:, None, :, None] * mask[:, None, None, :]
    eye = jnp.eye(length, dtype=bool)
    diag = jnp.where(eye, -jnp.inf, 0.0).astype(out.dtype)
    return out + diag


if __name__ == "__main__":
    batch, length, input_size, num_labels = 2, 8, 32, 4

    key = jax.random.PRNGKey(0)
    k_h, k_c, k_wd, k_we, k_u = jax.random.split(key, 5)

    input_h = jax.random.normal(k_h, (batch, length, input_size), jnp.float32)
    input_c = jax.random.normal(k_c, (batch, length, input_size), jnp.float32)

    # Deterministic synthetic parameters (shapes per BiAAttention.__init__).
    W_d = jax.random.normal(k_wd, (num_labels, input_size), jnp.float32) * 0.1
    W_e = jax.random.normal(k_we, (num_labels, input_size), jnp.float32) * 0.1
    U = jax.random.normal(k_u, (num_labels, input_size, input_size),
                          jnp.float32) * 0.05
    bias = jnp.zeros((num_labels,), jnp.float32)  # PyTorch init: constant 0

    # Mask: sentence lengths [8, 6].
    lengths = jnp.array([8, 6])
    mask = (jnp.arange(length)[None, :] < lengths[:, None]).astype(jnp.float32)

    ref = treecrf_reference(input_h, input_c, W_d, W_e, U, bias, mask=mask)

    # f32 MXU path: tight tolerance against the pure-JAX reference.
    out_f32 = jax.block_until_ready(
        treecrf_forward(input_h, input_c, W_d, W_e, U, bias, mask=mask,
                        use_bf16=False))
    assert out_f32.shape == (batch, num_labels, length, length)
    assert bool(jnp.allclose(out_f32, ref, rtol=1e-4, atol=1e-4)), \
        "Pallas f32 output does not match reference"

    # bf16 MXU path (default / fast): tolerance loosened for bf16 input rounding.
    out_bf16 = jax.block_until_ready(
        treecrf_forward(input_h, input_c, W_d, W_e, U, bias, mask=mask))
    assert out_bf16.shape == (batch, num_labels, length, length)
    assert bool(jnp.allclose(out_bf16, ref, rtol=5e-2, atol=5e-2)), \
        "Pallas bf16 output does not match reference"

    # mask=None specialization (no mask DMA streams / multiplies in the kernel).
    out_nm = jax.block_until_ready(
        treecrf_forward(input_h, input_c, W_d, W_e, U, bias, mask=None,
                        use_bf16=False))
    ref_nm = treecrf_reference(input_h, input_c, W_d, W_e, U, bias, mask=None)
    assert bool(jnp.allclose(out_nm, ref_nm, rtol=1e-4, atol=1e-4)), \
        "Pallas mask=None output does not match reference"

    print("KERNEL_OK")
</pallas_src>

<mosaic_0001>
module attributes {stable_mosaic.version = 11 : i64} {
  func.func @kernel(%arg0: i32, %arg1: i32, %arg2: i32, %arg3: memref<1x8x128xf32, #tpu.memory_space<vmem>>, %arg4: memref<1x128x128xf32, #tpu.memory_space<vmem>>, %arg5: memref<1x128x512xf32, #tpu.memory_space<vmem>>, %arg6: memref<1x8x1xf32, #tpu.memory_space<vmem>>, %arg7: memref<1x1x128xf32, #tpu.memory_space<vmem>>, %arg8: memref<1x4x8x128xf32, #tpu.memory_space<vmem>>) attributes {dimension_semantics = [#tpu.dimension_semantics<parallel>, #tpu.dimension_semantics<parallel>, #tpu.dimension_semantics<parallel>], iteration_bounds = array<i64: 2, 1, 1>, scalar_prefetch = 0 : i64, scratch_operands = 0 : i64, tpu.core_type = #tpu.core_type<tc>, window_params = [{transform_indices = @transform_0, window_bounds = array<i64: 1, 8, 128>}, {transform_indices = @transform_1, window_bounds = array<i64: 1, 128, 128>}, {transform_indices = @transform_2, window_bounds = array<i64: 1, 128, 512>}, {transform_indices = @transform_3, window_bounds = array<i64: 1, 8, 1>}, {transform_indices = @transform_4, window_bounds = array<i64: 1, 1, 128>}, {transform_indices = @transform_5, window_bounds = array<i64: 1, 4, 8, 128>}]} {
    %c0 = arith.constant 0 : index
    %c0_0 = arith.constant 0 : index
    %c0_1 = arith.constant 0 : index
    %0 = vector.load %arg3[%c0, %c0_0, %c0_1] : memref<1x8x128xf32, #tpu.memory_space<vmem>>, vector<1x8x128xf32>
    %1 = vector.shape_cast %0 : vector<1x8x128xf32> to vector<8x128xf32>
    %c0_2 = arith.constant 0 : index
    %c0_3 = arith.constant 0 : index
    %c0_4 = arith.constant 0 : index
    %2 = vector.load %arg4[%c0_2, %c0_3, %c0_4] : memref<1x128x128xf32, #tpu.memory_space<vmem>>, vector<1x128x128xf32>
    %3 = vector.shape_cast %2 : vector<1x128x128xf32> to vector<128x128xf32>
    %c0_5 = arith.constant 0 : index
    %c0_6 = arith.constant 0 : index
    %c0_7 = arith.constant 0 : index
    %4 = vector.load %arg5[%c0_5, %c0_6, %c0_7] : memref<1x128x512xf32, #tpu.memory_space<vmem>>, vector<1x128x512xf32>
    %5 = vector.shape_cast %4 : vector<1x128x512xf32> to vector<128x512xf32>
    %cst = arith.constant dense<0.000000e+00> : vector<8x512xf32>
    %6 = tpu.matmul %1, %5, %cst {dimension_numbers = #tpu.dot_dimension_numbers<[1], [0], [0], [1], [0, 0, 1, 1], [], []>} : vector<8x128xf32>, vector<128x512xf32>, vector<8x512xf32> -> vector<8x512xf32>
    %7 = tpu.iota {dimensions = array<i32: 0>} : vector<8x128xi32>
    %c8_i32 = arith.constant 8 : i32
    %8 = arith.muli %arg2, %c8_i32 : i32
    %9 = vector.broadcast %8 : i32 to vector<8x128xi32>
    %10 = arith.addi %7, %9 : vector<8x128xi32>
    %11 = tpu.iota {dimensions = array<i32: 1>} : vector<8x128xi32>
    %12 = arith.cmpi eq, %10, %11 : vector<8x128xi32>
    %c0_8 = arith.constant 0 : index
    %c0_9 = arith.constant 0 : index
    %c0_10 = arith.constant 0 : index
    %13 = vector.load %arg6[%c0_8, %c0_9, %c0_10] : memref<1x8x1xf32, #tpu.memory_space<vmem>>, vector<1x8x1xf32>
    %14 = vector.shape_cast %13 : vector<1x8x1xf32> to vector<8x1xf32>
    %c0_11 = arith.constant 0 : index
    %c0_12 = arith.constant 0 : index
    %c0_13 = arith.constant 0 : index
    %15 = vector.load %arg7[%c0_11, %c0_12, %c0_13] : memref<1x1x128xf32, #tpu.memory_space<vmem>>, vector<1x1x128xf32>
    %16 = vector.shape_cast %15 : vector<1x1x128xf32> to vector<1x128xf32>
    %17 = vector.broadcast %14 : vector<8x1xf32> to vector<8x128xf32>
    %18 = vector.broadcast %16 : vector<1x128xf32> to vector<8x128xf32>
    %19 = arith.mulf %17, %18 : vector<8x128xf32>
    %20 = vector.extract_strided_slice %6 {offsets = [0, 0], sizes = [8, 128], strides = [1, 1]} : vector<8x512xf32> to vector<8x128xf32>
    %cst_14 = arith.constant dense<0.000000e+00> : vector<8x128xf32>
    %21 = tpu.matmul %20, %3, %cst_14 {dimension_numbers = #tpu.dot_dimension_numbers<[1], [0], [0], [1], [0, 0, 1, 1], [], []>} : vector<8x128xf32>, vector<128x128xf32>, vector<8x128xf32> -> vector<8x128xf32>
    %22 = arith.mulf %21, %19 : vector<8x128xf32>
    %cst_15 = arith.constant 0xFF800000 : f32
    %23 = vector.broadcast %cst_15 : f32 to vector<8x128xf32>
    %24 = arith.select %12, %23, %22 : vector<8x128xi1>, vector<8x128xf32>
    %c0_16 = arith.constant 0 : index
    %c0_17 = arith.constant 0 : index
    %c0_18 = arith.constant 0 : index
    %c0_19 = arith.constant 0 : index
    %25 = vector.load %arg8[%c0_16, %c0_17, %c0_18, %c0_19] : memref<1x4x8x128xf32, #tpu.memory_space<vmem>>, vector<1x1x8x128xf32>
    %26 = vector.shape_cast %25 : vector<1x1x8x128xf32> to vector<8x128xf32>
    %27 = vector.shape_cast %24 : vector<8x128xf32> to vector<1x1x8x128xf32>
    tpu.vector_store %arg8[%c0_16, %c0_17, %c0_18, %c0_19], %27 {strides = array<i32>} : memref<1x4x8x128xf32, #tpu.memory_space<vmem>>, vector<1x1x8x128xf32>,
    %28 = vector.extract_strided_slice %6 {offsets = [0, 128], sizes = [8, 128], strides = [1, 1]} : vector<8x512xf32> to vector<8x128xf32>
    %cst_20 = arith.constant dense<0.000000e+00> : vector<8x128xf32>
    %29 = tpu.matmul %28, %3, %cst_20 {dimension_numbers = #tpu.dot_dimension_numbers<[1], [0], [0], [1], [0, 0, 1, 1], [], []>} : vector<8x128xf32>, vector<128x128xf32>, vector<8x128xf32> -> vector<8x128xf32>
    %30 = arith.mulf %29, %19 : vector<8x128xf32>
    %cst_21 = arith.constant 0xFF800000 : f32
    %31 = vector.broadcast %cst_21 : f32 to vector<8x128xf32>
    %32 = arith.select %12, %31, %30 : vector<8x128xi1>, vector<8x128xf32>
    %c0_22 = arith.constant 0 : index
    %c1 = arith.constant 1 : index
    %c0_23 = arith.constant 0 : index
    %c0_24 = arith.constant 0 : index
    %33 = vector.load %arg8[%c0_22, %c1, %c0_23, %c0_24] : memref<1x4x8x128xf32, #tpu.memory_space<vmem>>, vector<1x1x8x128xf32>
    %34 = vector.shape_cast %33 : vector<1x1x8x128xf32> to vector<8x128xf32>
    %35 = vector.shape_cast %32 : vector<8x128xf32> to vector<1x1x8x128xf32>
    tpu.vector_store %arg8[%c0_22, %c1, %c0_23, %c0_24], %35 {strides = array<i32>} : memref<1x4x8x128xf32, #tpu.memory_space<vmem>>, vector<1x1x8x128xf32>,
    %36 = vector.extract_strided_slice %6 {offsets = [0, 256], sizes = [8, 128], strides = [1, 1]} : vector<8x512xf32> to vector<8x128xf32>
    %cst_25 = arith.constant dense<0.000000e+00> : vector<8x128xf32>
    %37 = tpu.matmul %36, %3, %cst_25 {dimension_numbers = #tpu.dot_dimension_numbers<[1], [0], [0], [1], [0, 0, 1, 1], [], []>} : vector<8x128xf32>, vector<128x128xf32>, vector<8x128xf32> -> vector<8x128xf32>
    %38 = arith.mulf %37, %19 : vector<8x128xf32>
    %cst_26 = arith.constant 0xFF800000 : f32
    %39 = vector.broadcast %cst_26 : f32 to vector<8x128xf32>
    %40 = arith.select %12, %39, %38 : vector<8x128xi1>, vector<8x128xf32>
    %c0_27 = arith.constant 0 : index
    %c2 = arith.constant 2 : index
    %c0_28 = arith.constant 0 : index
    %c0_29 = arith.constant 0 : index
    %41 = vector.load %arg8[%c0_27, %c2, %c0_28, %c0_29] : memref<1x4x8x128xf32, #tpu.memory_space<vmem>>, vector<1x1x8x128xf32>
    %42 = vector.shape_cast %41 : vector<1x1x8x128xf32> to vector<8x128xf32>
    %43 = vector.shape_cast %40 : vector<8x128xf32> to vector<1x1x8x128xf32>
    tpu.vector_store %arg8[%c0_27, %c2, %c0_28, %c0_29], %43 {strides = array<i32>} : memref<1x4x8x128xf32, #tpu.memory_space<vmem>>, vector<1x1x8x128xf32>,
    %44 = vector.extract_strided_slice %6 {offsets = [0, 384], sizes = [8, 128], strides = [1, 1]} : vector<8x512xf32> to vector<8x128xf32>
    %cst_30 = arith.constant dense<0.000000e+00> : vector<8x128xf32>
    %45 = tpu.matmul %44, %3, %cst_30 {dimension_numbers = #tpu.dot_dimension_numbers<[1], [0], [0], [1], [0, 0, 1, 1], [], []>} : vector<8x128xf32>, vector<128x128xf32>, vector<8x128xf32> -> vector<8x128xf32>
    %46 = arith.mulf %45, %19 : vector<8x128xf32>
    %cst_31 = arith.constant 0xFF800000 : f32
    %47 = vector.broadcast %cst_31 : f32 to vector<8x128xf32>
    %48 = arith.select %12, %47, %46 : vector<8x128xi1>, vector<8x128xf32>
    %c0_32 = arith.constant 0 : index
    %c3 = arith.constant 3 : index
    %c0_33 = arith.constant 0 : index
    %c0_34 = arith.constant 0 : index
    %49 = vector.load %arg8[%c0_32, %c3, %c0_33, %c0_34] : memref<1x4x8x128xf32, #tpu.memory_space<vmem>>, vector<1x1x8x128xf32>
    %50 = vector.shape_cast %49 : vector<1x1x8x128xf32> to vector<8x128xf32>
    %51 = vector.shape_cast %48 : vector<8x128xf32> to vector<1x1x8x128xf32>
    tpu.vector_store %arg8[%c0_32, %c3, %c0_33, %c0_34], %51 {strides = array<i32>} : memref<1x4x8x128xf32, #tpu.memory_space<vmem>>, vector<1x1x8x128xf32>,
    return
  }
  func.func @transform_0(%arg0: i32, %arg1: i32, %arg2: i32) -> (i32, i32, i32) {
    %c0_i32 = arith.constant 0 : i32
    %c0_i32_0 = arith.constant 0 : i32
    return %arg0, %arg2, %c0_i32 : i32, i32, i32
  }
  func.func @transform_1(%arg0: i32, %arg1: i32, %arg2: i32) -> (i32, i32, i32) {
    %c0_i32 = arith.constant 0 : i32
    %c0_i32_0 = arith.constant 0 : i32
    %c0_i32_1 = arith.constant 0 : i32
    return %arg0, %c0_i32, %c0_i32_0 : i32, i32, i32
  }
  func.func @transform_2(%arg0: i32, %arg1: i32, %arg2: i32) -> (i32, i32, i32) {
    %c0_i32 = arith.constant 0 : i32
    %c0_i32_0 = arith.constant 0 : i32
    %c0_i32_1 = arith.constant 0 : i32
    return %arg1, %c0_i32, %c0_i32_0 : i32, i32, i32
  }
  func.func @transform_3(%arg0: i32, %arg1: i32, %arg2: i32) -> (i32, i32, i32) {
    %c0_i32 = arith.constant 0 : i32
    %c0_i32_0 = arith.constant 0 : i32
    return %arg0, %arg2, %c0_i32 : i32, i32, i32
  }
  func.func @transform_4(%arg0: i32, %arg1: i32, %arg2: i32) -> (i32, i32, i32) {
    %c0_i32 = arith.constant 0 : i32
    %c0_i32_0 = arith.constant 0 : i32
    %c0_i32_1 = arith.constant 0 : i32
    return %arg0, %c0_i32, %c0_i32_0 : i32, i32, i32
  }
  func.func @transform_5(%arg0: i32, %arg1: i32, %arg2: i32) -> (i32, i32, i32, i32) {
    %c0_i32 = arith.constant 0 : i32
    %c0_i32_0 = arith.constant 0 : i32
    return %arg0, %arg1, %arg2, %c0_i32 : i32, i32, i32, i32
  }
}

</mosaic_0001>

<llo_original>
// kernel: tpu_custom_call.1
$region0: #{tpu_custom_call.1}
  #allocation0 [shape = 'u32[]', space=smem, size = 0x4, offset = 0x4, fixed_abs, tag = 'smem constant byte address 0x4 - core index']
  #allocation1 [shape = 'u32[144,128]{1,0:T(1,128)}', space=vmem, size = 0x12000, scoped, tag = 'internal scratch']
  %s0 = inlined_call_operand.vmem [shape: f32[2,8,128], index: 0, kind: input, shape index: {}]
  %s1 = inlined_call_operand.hbm [shape: f32[2,128,128], index: 1, kind: input, shape index: {}]
  %s2 = inlined_call_operand.hbm [shape: f32[1,128,512], index: 2, kind: input, shape index: {}]
  %s3 = inlined_call_operand.vmem [shape: f32[2,8,1], index: 3, kind: input, shape index: {}]
  %s4 = inlined_call_operand.vmem [shape: f32[2,1,128], index: 4, kind: input, shape index: {}]
  %s5 = inlined_call_operand.hbm [shape: f32[2,4,8,128], index: 5, kind: output, shape index: {}]
  %s6 = sld [smem:[#allocation0]]
  $region61: #{tpu_custom_call.1} parent=0
    _
  %s8 = ssub.s32 1, %s6
  %s9 = scalar_select 0, %s8, %s6
  $region1: #{tpu_custom_call.1} parent=0
    #allocation2 [shape = 'u8[131072]{0}', space=vmem, size = 0x20000, scoped, tag = 'input window, operand 1']
    #allocation3 [shape = 's32[2]{0}', space=sflag, size = 0x8, scoped, tag = 'scoped memory for tpu_custom_call.1']
    #allocation4 [shape = 's32[2]{0}', space=sflag, size = 0x8, scoped, tag = 'scoped memory for tpu_custom_call.1']
    #allocation5 [shape = 'u8[262144]{0}', space=vmem, size = 0x40000, scoped, tag = 'input window, operand 2, single buffered']
    #allocation6 [shape = 's32[1]{0}', space=sflag, size = 0x4, scoped, tag = 'scoped memory for tpu_custom_call.1']
    #allocation7 [shape = 'u8[32768]{0}', space=vmem, size = 0x8000, scoped, tag = 'output window, operand 0']
    %10 = vsyncpa [#allocation3], 0
    %s11 = scalar_lea.sflag [#allocation3], 1
    %12 = vsyncpa %s11, 0
    %13 = vsyncpa [#allocation6], 0
    %14 = vsyncpa [#allocation4], 0
    %s15 = scalar_lea.sflag [#allocation4], 1
    %16 = vsyncpa %s15, 0
    loop: start=0, step=1, limit=4
    $region2: #{tpu_custom_call.1} parent=1 // loop_pre_header
      _
    $region3: #{tpu_custom_call.1} parent=1 // loop_header
      %s18 = sphi 0, %s22
      %p19 = scmp.ge.s32.totalorder %s18, 4
      %s25 = sphi 0, %s44
      %s26 = sphi 0, %s40
      %s27 = sphi 0, %s36
      %s28 = sphi 0, %s25
      %s29 = sphi 0, %s26
      %s30 = sphi 0, %s27
      %s31 = sphi 0, %s28
      %s32 = sphi 0, %s29
      %s33 = sphi 0, %s30
      %s49 = sphi 0, %s51
      %s52 = sphi 0, %s49
      %s53 = sphi 0, %s52
      %s69 = sphi 0, %s53
      %s75 = sphi 0, %s77
      %s78 = sphi 0, %s75
      %s79 = sphi 0, %s78
      %s95 = sphi 0, %s79
      %s101 = sphi 0, %s103
      %s104 = sphi 0, %s101
      %s105 = sphi 0, %s104
      %s121 = sphi 0, %s105
      %s129 = sphi 0, %s131
      %s132 = sphi 0, %s129
      %s133 = sphi 0, %s132
      %s149 = sphi 0, %s133
      %s155 = sphi 0, %s157
      %s158 = sphi 0, %s155
      %s159 = sphi 0, %s158
      %s175 = sphi 0, %s159
      %s185 = sphi 0, %s187
      %s188 = sphi 0, %s185
      %s189 = sphi 0, %s188
      %s205 = sphi 0, %s189
    $region4: #{tpu_custom_call.1} parent=1 // loop_header_branch
      %21 = sbr.rel (%p19) target = $region8
    $region5: #{tpu_custom_call.1} parent=1 // loop_body
      %s23 = ssub.s32 %s18, 1
      %s24 = ssub.s32 %s18, 2
      %s34 = sadd.s32 1, %s27
      %p35 = scmp.ge.s32.totalorder %s34, 1
      %s36 = scalar_select %p35, 0, %s34
      %s37 = sadd.s32 1, %s26
      %s38 = scalar_select %p35, %s37, %s26
      %p39 = scmp.ge.s32.totalorder %s38, 1
      %s40 = scalar_select %p39, 0, %s38
      %s41 = sadd.s32 1, %s25
      %s42 = scalar_select %p39, %s41, %s25
      %p43 = scmp.ge.s32.totalorder %s42, 2
      %s44 = scalar_select %p43, 0, %s42
      %s45 = ssub.s32 %s25, %s44
      %s46 = ssub.s32 %s27, %s36
      %s47 = sor.u32 %s45, %s46
      %p48 = scmp.eq.s32.totalorder %s47, 0
      %s50 = sadd.s32 %s49, 1
      %s51 = scalar_select %p48, %s49, %s50
      %p54 = pneg %p48
      %p55 = scmp.eq.s32.totalorder %s18, 1
      %p56 = por %p54, %p55
      %p57 = scmp.ne.s32.totalorder %s49, %s52
      %p58 = scmp.eq.s32.totalorder %s18, 0
      %p59 = por %p57, %p58
      %p60 = scmp.ne.s32.totalorder %s49, %s52
      %p61 = scmp.eq.s32.totalorder %s23, 1
      %p62 = por %p60, %p61
      %p63 = scmp.ne.s32.totalorder %s52, %s53
      %p64 = scmp.eq.s32.totalorder %s23, 0
      %p65 = por %p63, %p64
      %p66 = scmp.ne.s32.totalorder %s52, %s53
      %p67 = scmp.eq.s32.totalorder %s24, 1
      %p68 = por %p66, %p67
      %p70 = scmp.ne.s32.totalorder %s53, %s69
      %p71 = scmp.eq.s32.totalorder %s24, 0
      %p72 = por %p70, %p71
      %s73 = ssub.s32 %s25, %s44
      %p74 = scmp.eq.s32.totalorder %s73, 0
      %s76 = sadd.s32 %s75, 1
      %s77 = scalar_select %p74, %s75, %s76
      %p80 = pneg %p74
      %p81 = scmp.eq.s32.totalorder %s18, 1
      %p82 = por %p80, %p81
      %p83 = scmp.ne.s32.totalorder %s75, %s78
      %p84 = scmp.eq.s32.totalorder %s18, 0
      %p85 = por %p83, %p84
      %p86 = scmp.ne.s32.totalorder %s75, %s78
      %p87 = scmp.eq.s32.totalorder %s23, 1
      %p88 = por %p86, %p87
      %p89 = scmp.ne.s32.totalorder %s78, %s79
      %p90 = scmp.eq.s32.totalorder %s23, 0
      %p91 = por %p89, %p90
      %p92 = scmp.ne.s32.totalorder %s78, %s79
      %p93 = scmp.eq.s32.totalorder %s24, 1
      %p94 = por %p92, %p93
      %p96 = scmp.ne.s32.totalorder %s79, %s95
      %p97 = scmp.eq.s32.totalorder %s24, 0
      %p98 = por %p96, %p97
      %s99 = ssub.s32 %s26, %s40
      %p100 = scmp.eq.s32.totalorder %s99, 0
      %s102 = sadd.s32 %s101, 1
      %s103 = scalar_select %p100, %s101, %s102
      %p106 = pneg %p100
      %p107 = scmp.eq.s32.totalorder %s18, 1
      %p108 = por %p106, %p107
      %p109 = scmp.ne.s32.totalorder %s101, %s104
      %p110 = scmp.eq.s32.totalorder %s18, 0
      %p111 = por %p109, %p110
      %p112 = scmp.ne.s32.totalorder %s101, %s104
      %p113 = scmp.eq.s32.totalorder %s23, 1
      %p114 = por %p112, %p113
      %p115 = scmp.ne.s32.totalorder %s104, %s105
      %p116 = scmp.eq.s32.totalorder %s23, 0
      %p117 = por %p115, %p116
      %p118 = scmp.ne.s32.totalorder %s104, %s105
      %p119 = scmp.eq.s32.totalorder %s24, 1
      %p120 = por %p118, %p119
      %p122 = scmp.ne.s32.totalorder %s105, %s121
      %p123 = scmp.eq.s32.totalorder %s24, 0
      %p124 = por %p122, %p123
      %s125 = ssub.s32 %s25, %s44
      %s126 = ssub.s32 %s27, %s36
      %s127 = sor.u32 %s125, %s126
      %p128 = scmp.eq.s32.totalorder %s127, 0
      %s130 = sadd.s32 %s129, 1
      %s131 = scalar_select %p128, %s129, %s130
      %p134 = pneg %p128
      %p135 = scmp.eq.s32.totalorder %s18, 1
      %p136 = por %p134, %p135
      %p137 = scmp.ne.s32.totalorder %s129, %s132
      %p138 = scmp.eq.s32.totalorder %s18, 0
      %p139 = por %p137, %p138
      %p140 = scmp.ne.s32.totalorder %s129, %s132
      %p141 = scmp.eq.s32.totalorder %s23, 1
      %p142 = por %p140, %p141
      %p143 = scmp.ne.s32.totalorder %s132, %s133
      %p144 = scmp.eq.s32.totalorder %s23, 0
      %p145 = por %p143, %p144
      %p146 = scmp.ne.s32.totalorder %s132, %s133
      %p147 = scmp.eq.s32.totalorder %s24, 1
      %p148 = por %p146, %p147
      %p150 = scmp.ne.s32.totalorder %s133, %s149
      %p151 = scmp.eq.s32.totalorder %s24, 0
      %p152 = por %p150, %p151
      %s153 = ssub.s32 %s25, %s44
      %p154 = scmp.eq.s32.totalorder %s153, 0
      %s156 = sadd.s32 %s155, 1
      %s157 = scalar_select %p154, %s155, %s156
      %p160 = pneg %p154
      %p161 = scmp.eq.s32.totalorder %s18, 1
      %p162 = por %p160, %p161
      %p163 = scmp.ne.s32.totalorder %s155, %s158
      %p164 = scmp.eq.s32.totalorder %s18, 0
      %p165 = por %p163, %p164
      %p166 = scmp.ne.s32.totalorder %s155, %s158
      %p167 = scmp.eq.s32.totalorder %s23, 1
      %p168 = por %p166, %p167
      %p169 = scmp.ne.s32.totalorder %s158, %s159
      %p170 = scmp.eq.s32.totalorder %s23, 0
      %p171 = por %p169, %p170
      %p172 = scmp.ne.s32.totalorder %s158, %s159
      %p173 = scmp.eq.s32.totalorder %s24, 1
      %p174 = por %p172, %p173
      %p176 = scmp.ne.s32.totalorder %s159, %s175
      %p177 = scmp.eq.s32.totalorder %s24, 0
      %p178 = por %p176, %p177
      %s179 = ssub.s32 %s25, %s44
      %s180 = ssub.s32 %s26, %s40
      %s181 = sor.u32 %s179, %s180
      %s182 = ssub.s32 %s27, %s36
      %s183 = sor.u32 %s181, %s182
      %p184 = scmp.eq.s32.totalorder %s183, 0
      %s186 = sadd.s32 %s185, 1
      %s187 = scalar_select %p184, %s185, %s186
      %p190 = pneg %p184
      %p191 = scmp.eq.s32.totalorder %s18, 1
      %p192 = por %p190, %p191
      %p193 = scmp.ne.s32.totalorder %s185, %s188
      %p194 = scmp.eq.s32.totalorder %s18, 0
      %p195 = por %p193, %p194
      %p196 = scmp.ne.s32.totalorder %s185, %s188
      %p197 = scmp.eq.s32.totalorder %s23, 1
      %p198 = por %p196, %p197
      %p199 = scmp.ne.s32.totalorder %s188, %s189
      %p200 = scmp.eq.s32.totalorder %s23, 0
      %p201 = por %p199, %p200
      %p202 = scmp.ne.s32.totalorder %s188, %s189
      %p203 = scmp.eq.s32.totalorder %s24, 1
      %p204 = por %p202, %p203
      %p206 = scmp.ne.s32.totalorder %s189, %s205
      %p207 = scmp.eq.s32.totalorder %s24, 0
      %p208 = por %p206, %p207
      %p209 = scmp.le.s32.totalorder 1, %s18
      %p210 = scmp.lt.s32.totalorder %s18, 3
      %p211 = pnand %p209, %p210
      %p212 = pneg %p211
      // Predicated region
      $region9: #{tpu_custom_call.1} parent=5 // pred_check
        _
      $region10: #{tpu_custom_call.1} parent=5 // pred_check_branch
        %214 = sbr.rel (%p211) target = $region12
      $region11: #{tpu_custom_call.1} parent=5 // pred_region
        %s215 = ssub.s32 %s18, 1
        // Predicated region
        $region13: #{tpu_custom_call.1} parent=11 // pred_check
          %p216 = pneg %p117
        $region14: #{tpu_custom_call.1} parent=11 // pred_check_branch
          %218 = sbr.rel (%p216) target = $region16
        $region15: #{tpu_custom_call.1} parent=11 // pred_region
          %s220 = ssub.s32 8192, 8192
          %221 = vsyncadd [#allocation6], %s220
          %s222 = smul.addr %s29, 64
          %s223 = smul.addr %s222, 128
          %s224 = scalar_lea.hbm %s2, %s223
          %s225 = sshll.u32 [#allocation5], 4
          %s226 = int_to_ptr.vmem [resolvable:$true] %s225
          %231 = dma.hbm_to_vmem [thread:$0]  %s224, 8192, %s226, [#allocation6], 512, 512, 32
        $region16: #{tpu_custom_call.1} parent=11 // pred_fallthru
          _
      $region12: #{tpu_custom_call.1} parent=5 // pred_fallthru
        _
      %p232 = scmp.lt.s32.totalorder %s18, 2
      // Predicated region
      $region17: #{tpu_custom_call.1} parent=5 // pred_check
        %p233 = pneg %p232
      $region18: #{tpu_custom_call.1} parent=5 // pred_check_branch
        %235 = sbr.rel (%p233) target = $region20
      $region19: #{tpu_custom_call.1} parent=5 // pred_region
        // Predicated region
        $region21: #{tpu_custom_call.1} parent=19 // pred_check
          %p236 = pneg %p59
        $region22: #{tpu_custom_call.1} parent=19 // pred_check_branch
          %238 = sbr.rel (%p236) target = $region24
        $region23: #{tpu_custom_call.1} parent=19 // pred_region
          %p239 = scmp.lt.s32.totalorder %s25, 1
          %s240 = scalar_select %p239, %s25, 1
          %p241 = scmp.lt.s32.totalorder %s27, 0
          %s242 = scalar_select %p241, %s27, 0
          %s243 = sadd.s32 %s242, %s240
          %s244 = smul.addr %s243, 8
          %s245 = scalar_lea.vmem %s0, %s244
        $region24: #{tpu_custom_call.1} parent=19 // pred_fallthru
          _
        // Predicated region
        $region25: #{tpu_custom_call.1} parent=19 // pred_check
          %p246 = pneg %p85
        $region26: #{tpu_custom_call.1} parent=19 // pred_check_branch
          %248 = sbr.rel (%p246) target = $region28
        $region27: #{tpu_custom_call.1} parent=19 // pred_region
          %s249 = sand.u32 %s75, 1
          %s250 = scalar_lea.sflag [#allocation3], %s249
          %s251 = sand.u32 %s75, 1
          %s252 = smul.addr %s251, 128
          %s253 = scalar_lea.vmem [#allocation2], %s252
          %s255 = ssub.s32 2048, 2048
          %256 = vsyncadd %s250, %s255
          %s257 = smul.addr %s25, 16
          %s258 = smul.addr %s257, 128
          %s259 = scalar_lea.hbm %s1, %s258
          %s260 = sshll.u32 %s253, 4
          %s261 = int_to_ptr.vmem [resolvable:$true] %s260
          %266 = dma.hbm_to_vmem [thread:$0]  %s259, 2048, %s261, %s250, 128, 128, 8
        $region28: #{tpu_custom_call.1} parent=19 // pred_fallthru
          _
        // Predicated region
        $region29: #{tpu_custom_call.1} parent=19 // pred_check
          %p267 = pneg %p139
        $region30: #{tpu_custom_call.1} parent=19 // pred_check_branch
          %269 = sbr.rel (%p267) target = $region32
        $region31: #{tpu_custom_call.1} parent=19 // pred_region
          %p270 = scmp.lt.s32.totalorder %s25, 1
          %s271 = scalar_select %p270, %s25, 1
          %p272 = scmp.lt.s32.totalorder %s27, 0
          %s273 = scalar_select %p272, %s27, 0
          %s274 = sadd.s32 %s273, %s271
          %s275 = smul.addr %s274, 8
          %s276 = scalar_lea.vmem %s3, %s275
        $region32: #{tpu_custom_call.1} parent=19 // pred_fallthru
          _
        // Predicated region
        $region33: #{tpu_custom_call.1} parent=19 // pred_check
          %p277 = pneg %p165
        $region34: #{tpu_custom_call.1} parent=19 // pred_check_branch
          %279 = sbr.rel (%p277) target = $region36
        $region35: #{tpu_custom_call.1} parent=19 // pred_region
          %p280 = scmp.lt.s32.totalorder %s25, 1
          %s281 = scalar_select %p280, %s25, 1
          %s282 = scalar_lea.vmem %s4, %s281
        $region36: #{tpu_custom_call.1} parent=19 // pred_fallthru
          _
      $region20: #{tpu_custom_call.1} parent=5 // pred_fallthru
        _
      %p283 = scmp.le.s32.totalorder 1, %s18
      %p284 = scmp.lt.s32.totalorder %s18, 3
      %p285 = pnand %p283, %p284
      %p286 = pneg %p285
      // Predicated region
      $region37: #{tpu_custom_call.1} parent=5 // pred_check
        _
      $region38: #{tpu_custom_call.1} parent=5 // pred_check_branch
        %288 = sbr.rel (%p285) target = $region40
      $region39: #{tpu_custom_call.1} parent=5 // pred_region
        %s289 = ssub.s32 %s18, 1
        %s290 = sand.u32 %s78, 1
        %s291 = scalar_lea.sflag [#allocation3], %s290
        %s292 = sand.u32 %s78, 1
        %s293 = smul.addr %s292, 128
        %s294 = scalar_lea.vmem [#allocation2], %s293
        // Predicated region
        $region41: #{tpu_custom_call.1} parent=39 // pred_check
          %p295 = pneg %p91
        $region42: #{tpu_custom_call.1} parent=39 // pred_check_branch
          %297 = sbr.rel (%p295) target = $region44
        $region43: #{tpu_custom_call.1} parent=39 // pred_region
          %298 = dma.done %s291, 2048
        $region44: #{tpu_custom_call.1} parent=39 // pred_fallthru
          _
        // Predicated region
        $region45: #{tpu_custom_call.1} parent=39 // pred_check
          %p299 = pneg %p117
        $region46: #{tpu_custom_call.1} parent=39 // pred_check_branch
          %301 = sbr.rel (%p299) target = $region48
        $region47: #{tpu_custom_call.1} parent=39 // pred_region
          %302 = dma.done [#allocation6], 8192
        $region48: #{tpu_custom_call.1} parent=39 // pred_fallthru
          _
        %p303 = scmp.lt.s32.totalorder %s28, 1
        %s304 = scalar_select %p303, %s28, 1
        %p305 = scmp.lt.s32.totalorder %s30, 0
        %s306 = scalar_select %p305, %s30, 0
        %s307 = sadd.s32 %s306, %s304
        %s308 = smul.addr %s307, 8
        %s309 = scalar_lea.vmem %s0, %s308
        %p310 = pneg %p65
        %p311 = pneg %p62
        %s312 = sand.u32 %s78, 1
        %s313 = scalar_lea.sflag [#allocation3], %s312
        %s314 = sand.u32 %s78, 1
        %s315 = smul.addr %s314, 128
        %s316 = scalar_lea.vmem [#allocation2], %s315
        %p317 = pneg %p91
        %p318 = pneg %p88
        %p319 = pneg %p117
        %p320 = pneg %p114
        %p321 = scmp.lt.s32.totalorder %s28, 1
        %s322 = scalar_select %p321, %s28, 1
        %p323 = scmp.lt.s32.totalorder %s30, 0
        %s324 = scalar_select %p323, %s30, 0
        %s325 = sadd.s32 %s324, %s322
        %s326 = smul.addr %s325, 8
        %s327 = scalar_lea.vmem %s3, %s326
        %p328 = pneg %p145
        %p329 = pneg %p142
        %p330 = scmp.lt.s32.totalorder %s28, 1
        %s331 = scalar_select %p330, %s28, 1
        %s332 = scalar_lea.vmem %s4, %s331
        %p333 = pneg %p171
        %p334 = pneg %p168
        %p335 = pneg %p201
        %p336 = pneg %p198
        %s337 = sand.u32 %s188, 1
        %s338 = scalar_lea.sflag [#allocation4], %s337
        %s339 = sand.u32 %s188, 1
        %s340 = smul.addr %s339, 32
        %s341 = scalar_lea.vmem [#allocation7], %s340
        %p342 = scmp.lt.s32.totalorder %s28, 1
        %s343 = scalar_select %p342, %s28, 1
        %p344 = scmp.lt.s32.totalorder %s30, 0
        %s345 = scalar_select %p344, %s30, 0
        %s346 = sadd.s32 %s345, %s343
        %s347 = smul.addr %s346, 8
        %s348 = scalar_lea.vmem %s0, %s347
        %p349 = scmp.lt.s32.totalorder %s28, 1
        %s350 = scalar_select %p349, %s28, 1
        %p351 = scmp.lt.s32.totalorder %s30, 0
        %s352 = scalar_select %p351, %s30, 0
        %s353 = sadd.s32 %s352, %s350
        %s354 = smul.addr %s353, 8
        %s355 = scalar_lea.vmem %s3, %s354
        %p356 = scmp.lt.s32.totalorder %s28, 1
        %s357 = scalar_select %p356, %s28, 1
        %s358 = scalar_lea.vmem %s4, %s357
        %s359 = smul.u32 4, %s29
        %v360 = vld [vmem:[%s348] sm:$0xff]
        %v361 = vld [vmem:[%s294] sm:$0xff]
        %v362 = vld [vmem:[%s294 + $0x8] sm:$0xff]
        %v363 = vld [vmem:[%s294 + $0x10] sm:$0xff]
        %v364 = vld [vmem:[%s294 + $0x18] sm:$0xff]
        %v365 = vld [vmem:[%s294 + $0x20] sm:$0xff]
        %v366 = vld [vmem:[%s294 + $0x28] sm:$0xff]
        %v367 = vld [vmem:[%s294 + $0x30] sm:$0xff]
        %v368 = vld [vmem:[%s294 + $0x38] sm:$0xff]
        %v369 = vld [vmem:[%s294 + $0x40] sm:$0xff]
        %v370 = vld [vmem:[%s294 + $0x48] sm:$0xff]
        %v371 = vld [vmem:[%s294 + $0x50] sm:$0xff]
        %v372 = vld [vmem:[%s294 + $0x58] sm:$0xff]
        %v373 = vld [vmem:[%s294 + $0x60] sm:$0xff]
        %v374 = vld [vmem:[%s294 + $0x68] sm:$0xff]
        %v375 = vld [vmem:[%s294 + $0x70] sm:$0xff]
        %v376 = vld [vmem:[%s294 + $0x78] sm:$0xff]
        %v377 = vld [vmem:[#allocation5] sm:$0xff]
        %v378 = vld [vmem:[#allocation5 + $0x8] sm:$0xff]
        %v379 = vld [vmem:[#allocation5 + $0x10] sm:$0xff]
        %v380 = vld [vmem:[#allocation5 + $0x18] sm:$0xff]
        %v381 = vld [vmem:[#allocation5 + $0x20] sm:$0xff]
        %v382 = vld [vmem:[#allocation5 + $0x28] sm:$0xff]
        %v383 = vld [vmem:[#allocation5 + $0x30] sm:$0xff]
        %v384 = vld [vmem:[#allocation5 + $0x38] sm:$0xff]
        %v385 = vld [vmem:[#allocation5 + $0x40] sm:$0xff]
        %v386 = vld [vmem:[#allocation5 + $0x48] sm:$0xff]
        %v387 = vld [vmem:[#allocation5 + $0x50] sm:$0xff]
        %v388 = vld [vmem:[#allocation5 + $0x58] sm:$0xff]
        %v389 = vld [vmem:[#allocation5 + $0x60] sm:$0xff]
        %v390 = vld [vmem:[#allocation5 + $0x68] sm:$0xff]
        %v391 = vld [vmem:[#allocation5 + $0x70] sm:$0xff]
        %v392 = vld [vmem:[#allocation5 + $0x78] sm:$0xff]
        %v393 = vld [vmem:[#allocation5 + $0x80] sm:$0xff]
        %v394 = vld [vmem:[#allocation5 + $0x88] sm:$0xff]
        %v395 = vld [vmem:[#allocation5 + $0x90] sm:$0xff]
        %v396 = vld [vmem:[#allocation5 + $0x98] sm:$0xff]
        %v397 = vld [vmem:[#allocation5 + $0xa0] sm:$0xff]
        %v398 = vld [vmem:[#allocation5 + $0xa8] sm:$0xff]
        %v399 = vld [vmem:[#allocation5 + $0xb0] sm:$0xff]
        %v400 = vld [vmem:[#allocation5 + $0xb8] sm:$0xff]
        %v401 = vld [vmem:[#allocation5 + $0xc0] sm:$0xff]
        %v402 = vld [vmem:[#allocation5 + $0xc8] sm:$0xff]
        %v403 = vld [vmem:[#allocation5 + $0xd0] sm:$0xff]
        %v404 = vld [vmem:[#allocation5 + $0xd8] sm:$0xff]
        %v405 = vld [vmem:[#allocation5 + $0xe0] sm:$0xff]
        %v406 = vld [vmem:[#allocation5 + $0xe8] sm:$0xff]
        %v407 = vld [vmem:[#allocation5 + $0xf0] sm:$0xff]
        %v408 = vld [vmem:[#allocation5 + $0xf8] sm:$0xff]
        %v409 = vld [vmem:[#allocation5 + $0x100] sm:$0xff]
        %v410 = vld [vmem:[#allocation5 + $0x108] sm:$0xff]
        %v411 = vld [vmem:[#allocation5 + $0x110] sm:$0xff]
        %v412 = vld [vmem:[#allocation5 + $0x118] sm:$0xff]
        %v413 = vld [vmem:[#allocation5 + $0x120] sm:$0xff]
        %v414 = vld [vmem:[#allocation5 + $0x128] sm:$0xff]
        %v415 = vld [vmem:[#allocation5 + $0x130] sm:$0xff]
        %v416 = vld [vmem:[#allocation5 + $0x138] sm:$0xff]
        %v417 = vld [vmem:[#allocation5 + $0x140] sm:$0xff]
        %v418 = vld [vmem:[#allocation5 + $0x148] sm:$0xff]
        %v419 = vld [vmem:[#allocation5 + $0x150] sm:$0xff]
        %v420 = vld [vmem:[#allocation5 + $0x158] sm:$0xff]
        %v421 = vld [vmem:[#allocation5 + $0x160] sm:$0xff]
        %v422 = vld [vmem:[#allocation5 + $0x168] sm:$0xff]
        %v423 = vld [vmem:[#allocation5 + $0x170] sm:$0xff]
        %v424 = vld [vmem:[#allocation5 + $0x178] sm:$0xff]
        %v425 = vld [vmem:[#allocation5 + $0x180] sm:$0xff]
        %v426 = vld [vmem:[#allocation5 + $0x188] sm:$0xff]
        %v427 = vld [vmem:[#allocation5 + $0x190] sm:$0xff]
        %v428 = vld [vmem:[#allocation5 + $0x198] sm:$0xff]
        %v429 = vld [vmem:[#allocation5 + $0x1a0] sm:$0xff]
        %v430 = vld [vmem:[#allocation5 + $0x1a8] sm:$0xff]
        %v431 = vld [vmem:[#allocation5 + $0x1b0] sm:$0xff]
        %v432 = vld [vmem:[#allocation5 + $0x1b8] sm:$0xff]
        %v433 = vld [vmem:[#allocation5 + $0x1c0] sm:$0xff]
        %v434 = vld [vmem:[#allocation5 + $0x1c8] sm:$0xff]
        %v435 = vld [vmem:[#allocation5 + $0x1d0] sm:$0xff]
        %v436 = vld [vmem:[#allocation5 + $0x1d8] sm:$0xff]
        %v437 = vld [vmem:[#allocation5 + $0x1e0] sm:$0xff]
        %v438 = vld [vmem:[#allocation5 + $0x1e8] sm:$0xff]
        %v439 = vld [vmem:[#allocation5 + $0x1f0] sm:$0xff]
        %v440 = vld [vmem:[#allocation5 + $0x1f8] sm:$0xff]
        %441 = vmatprep.subr.mxu0 %v438
        %442 = vmatpush1.msra.mxu0 %v437
        %443 = vmatprep.subr.mxu0 %v434
        %444 = vmatpush1.msra.mxu0 %v433
        %445 = vmatprep.subr.mxu0 %v430
        %446 = vmatpush1.msra.mxu0 %v429
        %447 = vmatprep.subr.mxu0 %v426
        %448 = vmatpush1.msra.mxu0 %v425
        %449 = vmatprep.subr.mxu0 %v422
        %450 = vmatpush1.msra.mxu0 %v421
        %451 = vmatprep.subr.mxu0 %v418
        %452 = vmatpush1.msra.mxu0 %v417
        %453 = vmatprep.subr.mxu0 %v414
        %454 = vmatpush1.msra.mxu0 %v413
        %455 = vmatprep.subr.mxu0 %v410
        %456 = vmatpush1.msra.mxu0 %v409
        %457 = vmatprep.subr.mxu0 %v406
        %458 = vmatpush1.msra.mxu0 %v405
        %459 = vmatprep.subr.mxu0 %v402
        %460 = vmatpush1.msra.mxu0 %v401
        %461 = vmatprep.subr.mxu0 %v398
        %462 = vmatpush1.msra.mxu0 %v397
        %463 = vmatprep.subr.mxu0 %v394
        %464 = vmatpush1.msra.mxu0 %v393
        %465 = vmatprep.subr.mxu0 %v390
        %466 = vmatpush1.msra.mxu0 %v389
        %467 = vmatprep.subr.mxu0 %v386
        %468 = vmatpush1.msra.mxu0 %v385
        %469 = vmatprep.subr.mxu0 %v382
        %470 = vmatpush1.msra.mxu0 %v381
        %471 = vmatprep.subr.mxu0 %v378
        %472 = vmatpush1.msra.mxu0 %v377
        %473 = vmatprep.subr.mxu0 0.0
        %474 = vmatpush2.msra.mxu0 0.0
        %475 = vmatprep.subr.mxu0 0.0
        %476 = vmatpush2.msra.mxu0 0.0
        %477 = vmatprep.subr.mxu0 0.0
        %478 = vmatpush2.msra.mxu0 0.0
        %479 = vmatprep.subr.mxu0 0.0
        %480 = vmatpush2.msra.mxu0 0.0
        %481 = vmatprep.subr.mxu0 0.0
        %482 = vmatpush2.msra.mxu0 0.0
        %483 = vmatprep.subr.mxu0 0.0
        %484 = vmatpush2.msra.mxu0 0.0
        %485 = vmatprep.subr.mxu0 0.0
        %486 = vmatpush2.msra.mxu0 0.0
        %487 = vmatprep.subr.mxu0 0.0
        %488 = vmatpush2.msra.mxu0 0.0
        %489 = vmatprep.subr.mxu0 0.0
        %490 = vmatpush2.msra.mxu0 0.0
        %491 = vmatprep.subr.mxu0 0.0
        %492 = vmatpush2.msra.mxu0 0.0
        %493 = vmatprep.subr.mxu0 0.0
        %494 = vmatpush2.msra.mxu0 0.0
        %495 = vmatprep.subr.mxu0 0.0
        %496 = vmatpush2.msra.mxu0 0.0
        %497 = vmatprep.subr.mxu0 0.0
        %498 = vmatpush2.msra.mxu0 0.0
        %499 = vmatprep.subr.mxu0 0.0
        %500 = vmatpush2.msra.mxu0 0.0
        %501 = vmatprep.subr.mxu0 0.0
        %502 = vmatpush2.msra.mxu0 0.0
        %503 = vmatprep.subr.mxu0 0.0
        %504 = vmatpush2.msra.mxu0 0.0
        %505 = vmatprep.mubr.f32.mxu0 0.0
        %506 = vmatmul.mubr.f32.gmra.mxu0 %v360
        %v507 = vpop.f32.mrf.mxu0
        %v508 = vadd.f32 0.0, %v507
        %v509 = vpop.f32.mrf.mxu0
        %v510 = vadd.f32 0.0, %v509
        %511 = vdwg.mxu0
        %512 = vmatprep.subr.mxu0 %v440
        %513 = vmatpush1.msra.mxu0 %v439
        %514 = vmatprep.subr.mxu0 %v436
        %515 = vmatpush1.msra.mxu0 %v435
        %516 = vmatprep.subr.mxu0 %v432
        %517 = vmatpush1.msra.mxu0 %v431
        %518 = vmatprep.subr.mxu0 %v428
        %519 = vmatpush1.msra.mxu0 %v427
        %520 = vmatprep.subr.mxu0 %v424
        %521 = vmatpush1.msra.mxu0 %v423
        %522 = vmatprep.subr.mxu0 %v420
        %523 = vmatpush1.msra.mxu0 %v419
        %524 = vmatprep.subr.mxu0 %v416
        %525 = vmatpush1.msra.mxu0 %v415
        %526 = vmatprep.subr.mxu0 %v412
        %527 = vmatpush1.msra.mxu0 %v411
        %528 = vmatprep.subr.mxu0 %v408
        %529 = vmatpush1.msra.mxu0 %v407
        %530 = vmatprep.subr.mxu0 %v404
        %531 = vmatpush1.msra.mxu0 %v403
        %532 = vmatprep.subr.mxu0 %v400
        %533 = vmatpush1.msra.mxu0 %v399
        %534 = vmatprep.subr.mxu0 %v396
        %535 = vmatpush1.msra.mxu0 %v395
        %536 = vmatprep.subr.mxu0 %v392
        %537 = vmatpush1.msra.mxu0 %v391
        %538 = vmatprep.subr.mxu0 %v388
        %539 = vmatpush1.msra.mxu0 %v387
        %540 = vmatprep.subr.mxu0 %v384
        %541 = vmatpush1.msra.mxu0 %v383
        %542 = vmatprep.subr.mxu0 %v380
        %543 = vmatpush1.msra.mxu0 %v379
        %544 = vmatprep.subr.mxu0 0.0
        %545 = vmatpush2.msra.mxu0 0.0
        %546 = vmatprep.subr.mxu0 0.0
        %547 = vmatpush2.msra.mxu0 0.0
        %548 = vmatprep.subr.mxu0 0.0
        %549 = vmatpush2.msra.mxu0 0.0
        %550 = vmatprep.subr.mxu0 0.0
        %551 = vmatpush2.msra.mxu0 0.0
        %552 = vmatprep.subr.mxu0 0.0
        %553 = vmatpush2.msra.mxu0 0.0
        %554 = vmatprep.subr.mxu0 0.0
        %555 = vmatpush2.msra.mxu0 0.0
        %556 = vmatprep.subr.mxu0 0.0
        %557 = vmatpush2.msra.mxu0 0.0
        %558 = vmatprep.subr.mxu0 0.0
        %559 = vmatpush2.msra.mxu0 0.0
        %560 = vmatprep.subr.mxu0 0.0
        %561 = vmatpush2.msra.mxu0 0.0
        %562 = vmatprep.subr.mxu0 0.0
        %563 = vmatpush2.msra.mxu0 0.0
        %564 = vmatprep.subr.mxu0 0.0
        %565 = vmatpush2.msra.mxu0 0.0
        %566 = vmatprep.subr.mxu0 0.0
        %567 = vmatpush2.msra.mxu0 0.0
        %568 = vmatprep.subr.mxu0 0.0
        %569 = vmatpush2.msra.mxu0 0.0
        %570 = vmatprep.subr.mxu0 0.0
        %571 = vmatpush2.msra.mxu0 0.0
        %572 = vmatprep.subr.mxu0 0.0
        %573 = vmatpush2.msra.mxu0 0.0
        %574 = vmatprep.subr.mxu0 0.0
        %575 = vmatpush2.msra.mxu0 0.0
        %576 = vmatprep.mubr.f32.mxu0 0.0
        %577 = vmatmul.mubr.f32.gmra.mxu0 %v360
        %v578 = vpop.f32.mrf.mxu0
        %v579 = vadd.f32 0.0, %v578
        %v580 = vpop.f32.mrf.mxu0
        %v581 = vadd.f32 0.0, %v580
        %582 = vdwg.mxu0
        %v583 = vlaneseq
        %v584 = vshrl.u32 %v583, 7
        %s585 = smul.u32 %s30, 8
        %v586 = vstv %s585
        %v587 = vadd.s32 %v584, %v586
        %v588 = vlaneseq
        %v589 = vand.u32 %v588, 127
        %vm590 = vcmp.eq.s32.totalorder %v587, %v589
        %v591 = vld [vmem:[%s355] sm:$0xff]
        %v592 = vld [vmem:[%s358] sm:$0x1]
        %594 = vset.pattern.permute.xlu0 0
        %595 = vperm.xlu0 %594, %v591
        %v596 = vpop.permute.xlu0 %595
        %v599 = vlaneseq
        %v600 = vshrl.u32 %v599, 7
        %v601 = vsub.s32 0, %v600
        %v602 = vrot.slane %v592, %v601
        %v604 = vmul.f32 %v596, %v602
        %605 = vmatprep.subr.mxu0 0.0
        %606 = vmatpush1.msra.mxu0 %v376
        %607 = vmatprep.subr.mxu0 0.0
        %608 = vmatpush1.msra.mxu0 %v375
        %609 = vmatprep.subr.mxu0 0.0
        %610 = vmatpush1.msra.mxu0 %v374
        %611 = vmatprep.subr.mxu0 0.0
        %612 = vmatpush1.msra.mxu0 %v373
        %613 = vmatprep.subr.mxu0 0.0
        %614 = vmatpush1.msra.mxu0 %v372
        %615 = vmatprep.subr.mxu0 0.0
        %616 = vmatpush1.msra.mxu0 %v371
        %617 = vmatprep.subr.mxu0 0.0
        %618 = vmatpush1.msra.mxu0 %v370
        %619 = vmatprep.subr.mxu0 0.0
        %620 = vmatpush1.msra.mxu0 %v369
        %621 = vmatprep.subr.mxu0 0.0
        %622 = vmatpush1.msra.mxu0 %v368
        %623 = vmatprep.subr.mxu0 0.0
        %624 = vmatpush1.msra.mxu0 %v367
        %625 = vmatprep.subr.mxu0 0.0
        %626 = vmatpush1.msra.mxu0 %v366
        %627 = vmatprep.subr.mxu0 0.0
        %628 = vmatpush1.msra.mxu0 %v365
        %629 = vmatprep.subr.mxu0 0.0
        %630 = vmatpush1.msra.mxu0 %v364
        %631 = vmatprep.subr.mxu0 0.0
        %632 = vmatpush1.msra.mxu0 %v363
        %633 = vmatprep.subr.mxu0 0.0
        %634 = vmatpush1.msra.mxu0 %v362
        %635 = vmatprep.subr.mxu0 0.0
        %636 = vmatpush1.msra.mxu0 %v361
        %637 = vmatprep.subr.mxu0 0.0
        %638 = vmatpush2.msra.mxu0 0.0
        %639 = vmatprep.subr.mxu0 0.0
        %640 = vmatpush2.msra.mxu0 0.0
        %641 = vmatprep.subr.mxu0 0.0
        %642 = vmatpush2.msra.mxu0 0.0
        %643 = vmatprep.subr.mxu0 0.0
        %644 = vmatpush2.msra.mxu0 0.0
        %645 = vmatprep.subr.mxu0 0.0
        %646 = vmatpush2.msra.mxu0 0.0
        %647 = vmatprep.subr.mxu0 0.0
        %648 = vmatpush2.msra.mxu0 0.0
        %649 = vmatprep.subr.mxu0 0.0
        %650 = vmatpush2.msra.mxu0 0.0
        %651 = vmatprep.subr.mxu0 0.0
        %652 = vmatpush2.msra.mxu0 0.0
        %653 = vmatprep.subr.mxu0 0.0
        %654 = vmatpush2.msra.mxu0 0.0
        %655 = vmatprep.subr.mxu0 0.0
        %656 = vmatpush2.msra.mxu0 0.0
        %657 = vmatprep.subr.mxu0 0.0
        %658 = vmatpush2.msra.mxu0 0.0
        %659 = vmatprep.subr.mxu0 0.0
        %660 = vmatpush2.msra.mxu0 0.0
        %661 = vmatprep.subr.mxu0 0.0
        %662 = vmatpush2.msra.mxu0 0.0
        %663 = vmatprep.subr.mxu0 0.0
        %664 = vmatpush2.msra.mxu0 0.0
        %665 = vmatprep.subr.mxu0 0.0
        %666 = vmatpush2.msra.mxu0 0.0
        %667 = vmatprep.subr.mxu0 0.0
        %668 = vmatpush2.msra.mxu0 0.0
        %669 = vmatprep.mubr.f32.mxu0 0.0
        %670 = vmatmul.mubr.f32.gmra.mxu0 %v508
        %v671 = vpop.f32.mrf.mxu0
        %v672 = vadd.f32 0.0, %v671
        %v673 = vpop.f32.mrf.mxu0
        %674 = vdwg.mxu0
        %v675 = vmul.f32 %v672, %v604
        %v676 = vsel %vm590, -inf, %v675
        %677 = vst [vmem:[%s341] sm:$0xff] %v676
        %678 = vmatprep.subr.mxu0 0.0
        %679 = vmatpush1.msra.mxu0 %v376
        %680 = vmatprep.subr.mxu0 0.0
        %681 = vmatpush1.msra.mxu0 %v375
        %682 = vmatprep.subr.mxu0 0.0
        %683 = vmatpush1.msra.mxu0 %v374
        %684 = vmatprep.subr.mxu0 0.0
        %685 = vmatpush1.msra.mxu0 %v373
        %686 = vmatprep.subr.mxu0 0.0
        %687 = vmatpush1.msra.mxu0 %v372
        %688 = vmatprep.subr.mxu0 0.0
        %689 = vmatpush1.msra.mxu0 %v371
        %690 = vmatprep.subr.mxu0 0.0
        %691 = vmatpush1.msra.mxu0 %v370
        %692 = vmatprep.subr.mxu0 0.0
        %693 = vmatpush1.msra.mxu0 %v369
        %694 = vmatprep.subr.mxu0 0.0
        %695 = vmatpush1.msra.mxu0 %v368
        %696 = vmatprep.subr.mxu0 0.0
        %697 = vmatpush1.msra.mxu0 %v367
        %698 = vmatprep.subr.mxu0 0.0
        %699 = vmatpush1.msra.mxu0 %v366
        %700 = vmatprep.subr.mxu0 0.0
        %701 = vmatpush1.msra.mxu0 %v365
        %702 = vmatprep.subr.mxu0 0.0
        %703 = vmatpush1.msra.mxu0 %v364
        %704 = vmatprep.subr.mxu0 0.0
        %705 = vmatpush1.msra.mxu0 %v363
        %706 = vmatprep.subr.mxu0 0.0
        %707 = vmatpush1.msra.mxu0 %v362
        %708 = vmatprep.subr.mxu0 0.0
        %709 = vmatpush1.msra.mxu0 %v361
        %710 = vmatprep.subr.mxu0 0.0
        %711 = vmatpush2.msra.mxu0 0.0
        %712 = vmatprep.subr.mxu0 0.0
        %713 = vmatpush2.msra.mxu0 0.0
        %714 = vmatprep.subr.mxu0 0.0
        %715 = vmatpush2.msra.mxu0 0.0
        %716 = vmatprep.subr.mxu0 0.0
        %717 = vmatpush2.msra.mxu0 0.0
        %718 = vmatprep.subr.mxu0 0.0
        %719 = vmatpush2.msra.mxu0 0.0
        %720 = vmatprep.subr.mxu0 0.0
        %721 = vmatpush2.msra.mxu0 0.0
        %722 = vmatprep.subr.mxu0 0.0
        %723 = vmatpush2.msra.mxu0 0.0
        %724 = vmatprep.subr.mxu0 0.0
        %725 = vmatpush2.msra.mxu0 0.0
        %726 = vmatprep.subr.mxu0 0.0
        %727 = vmatpush2.msra.mxu0 0.0
        %728 = vmatprep.subr.mxu0 0.0
        %729 = vmatpush2.msra.mxu0 0.0
        %730 = vmatprep.subr.mxu0 0.0
        %731 = vmatpush2.msra.mxu0 0.0
        %732 = vmatprep.subr.mxu0 0.0
        %733 = vmatpush2.msra.mxu0 0.0
        %734 = vmatprep.subr.mxu0 0.0
        %735 = vmatpush2.msra.mxu0 0.0
        %736 = vmatprep.subr.mxu0 0.0
        %737 = vmatpush2.msra.mxu0 0.0
        %738 = vmatprep.subr.mxu0 0.0
        %739 = vmatpush2.msra.mxu0 0.0
        %740 = vmatprep.subr.mxu0 0.0
        %741 = vmatpush2.msra.mxu0 0.0
        %742 = vmatprep.mubr.f32.mxu0 0.0
        %743 = vmatmul.mubr.f32.gmra.mxu0 %v510
        %v744 = vpop.f32.mrf.mxu0
        %v745 = vadd.f32 0.0, %v744
        %v746 = vpop.f32.mrf.mxu0
        %747 = vdwg.mxu0
        %v748 = vmul.f32 %v745, %v604
        %v749 = vsel %vm590, -inf, %v748
        %s750 = scalar_lea.vmem %s341, 8 [#allocation7]
        %751 = vst [vmem:[%s750] sm:$0xff] %v749
        %752 = vmatprep.subr.mxu0 0.0
        %753 = vmatpush1.msra.mxu0 %v376
        %754 = vmatprep.subr.mxu0 0.0
        %755 = vmatpush1.msra.mxu0 %v375
        %756 = vmatprep.subr.mxu0 0.0
        %757 = vmatpush1.msra.mxu0 %v374
        %758 = vmatprep.subr.mxu0 0.0
        %759 = vmatpush1.msra.mxu0 %v373
        %760 = vmatprep.subr.mxu0 0.0
        %761 = vmatpush1.msra.mxu0 %v372
        %762 = vmatprep.subr.mxu0 0.0
        %763 = vmatpush1.msra.mxu0 %v371
        %764 = vmatprep.subr.mxu0 0.0
        %765 = vmatpush1.msra.mxu0 %v370
        %766 = vmatprep.subr.mxu0 0.0
        %767 = vmatpush1.msra.mxu0 %v369
        %768 = vmatprep.subr.mxu0 0.0
        %769 = vmatpush1.msra.mxu0 %v368
        %770 = vmatprep.subr.mxu0 0.0
        %771 = vmatpush1.msra.mxu0 %v367
        %772 = vmatprep.subr.mxu0 0.0
        %773 = vmatpush1.msra.mxu0 %v366
        %774 = vmatprep.subr.mxu0 0.0
        %775 = vmatpush1.msra.mxu0 %v365
        %776 = vmatprep.subr.mxu0 0.0
        %777 = vmatpush1.msra.mxu0 %v364
        %778 = vmatprep.subr.mxu0 0.0
        %779 = vmatpush1.msra.mxu0 %v363
        %780 = vmatprep.subr.mxu0 0.0
        %781 = vmatpush1.msra.mxu0 %v362
        %782 = vmatprep.subr.mxu0 0.0
        %783 = vmatpush1.msra.mxu0 %v361
        %784 = vmatprep.subr.mxu0 0.0
        %785 = vmatpush2.msra.mxu0 0.0
        %786 = vmatprep.subr.mxu0 0.0
        %787 = vmatpush2.msra.mxu0 0.0
        %788 = vmatprep.subr.mxu0 0.0
        %789 = vmatpush2.msra.mxu0 0.0
        %790 = vmatprep.subr.mxu0 0.0
        %791 = vmatpush2.msra.mxu0 0.0
        %792 = vmatprep.subr.mxu0 0.0
        %793 = vmatpush2.msra.mxu0 0.0
        %794 = vmatprep.subr.mxu0 0.0
        %795 = vmatpush2.msra.mxu0 0.0
        %796 = vmatprep.subr.mxu0 0.0
        %797 = vmatpush2.msra.mxu0 0.0
        %798 = vmatprep.subr.mxu0 0.0
        %799 = vmatpush2.msra.mxu0 0.0
        %800 = vmatprep.subr.mxu0 0.0
        %801 = vmatpush2.msra.mxu0 0.0
        %802 = vmatprep.subr.mxu0 0.0
        %803 = vmatpush2.msra.mxu0 0.0
        %804 = vmatprep.subr.mxu0 0.0
        %805 = vmatpush2.msra.mxu0 0.0
        %806 = vmatprep.subr.mxu0 0.0
        %807 = vmatpush2.msra.mxu0 0.0
        %808 = vmatprep.subr.mxu0 0.0
        %809 = vmatpush2.msra.mxu0 0.0
        %810 = vmatprep.subr.mxu0 0.0
        %811 = vmatpush2.msra.mxu0 0.0
        %812 = vmatprep.subr.mxu0 0.0
        %813 = vmatpush2.msra.mxu0 0.0
        %814 = vmatprep.subr.mxu0 0.0
        %815 = vmatpush2.msra.mxu0 0.0
        %816 = vmatprep.mubr.f32.mxu0 0.0
        %817 = vmatmul.mubr.f32.gmra.mxu0 %v579
        %v818 = vpop.f32.mrf.mxu0
        %v819 = vadd.f32 0.0, %v818
        %v820 = vpop.f32.mrf.mxu0
        %821 = vdwg.mxu0
        %v822 = vmul.f32 %v819, %v604
        %v823 = vsel %vm590, -inf, %v822
        %s824 = scalar_lea.vmem %s341, 16 [#allocation7]
        %825 = vst [vmem:[%s824] sm:$0xff] %v823
        %826 = vmatprep.subr.mxu0 0.0
        %827 = vmatpush1.msra.mxu0 %v376
        %828 = vmatprep.subr.mxu0 0.0
        %829 = vmatpush1.msra.mxu0 %v375
        %830 = vmatprep.subr.mxu0 0.0
        %831 = vmatpush1.msra.mxu0 %v374
        %832 = vmatprep.subr.mxu0 0.0
        %833 = vmatpush1.msra.mxu0 %v373
        %834 = vmatprep.subr.mxu0 0.0
        %835 = vmatpush1.msra.mxu0 %v372
        %836 = vmatprep.subr.mxu0 0.0
        %837 = vmatpush1.msra.mxu0 %v371
        %838 = vmatprep.subr.mxu0 0.0
        %839 = vmatpush1.msra.mxu0 %v370
        %840 = vmatprep.subr.mxu0 0.0
        %841 = vmatpush1.msra.mxu0 %v369
        %842 = vmatprep.subr.mxu0 0.0
        %843 = vmatpush1.msra.mxu0 %v368
        %844 = vmatprep.subr.mxu0 0.0
        %845 = vmatpush1.msra.mxu0 %v367
        %846 = vmatprep.subr.mxu0 0.0
        %847 = vmatpush1.msra.mxu0 %v366
        %848 = vmatprep.subr.mxu0 0.0
        %849 = vmatpush1.msra.mxu0 %v365
        %850 = vmatprep.subr.mxu0 0.0
        %851 = vmatpush1.msra.mxu0 %v364
        %852 = vmatprep.subr.mxu0 0.0
        %853 = vmatpush1.msra.mxu0 %v363
        %854 = vmatprep.subr.mxu0 0.0
        %855 = vmatpush1.msra.mxu0 %v362
        %856 = vmatprep.subr.mxu0 0.0
        %857 = vmatpush1.msra.mxu0 %v361
        %858 = vmatprep.subr.mxu0 0.0
        %859 = vmatpush2.msra.mxu0 0.0
        %860 = vmatprep.subr.mxu0 0.0
        %861 = vmatpush2.msra.mxu0 0.0
        %862 = vmatprep.subr.mxu0 0.0
        %863 = vmatpush2.msra.mxu0 0.0
        %864 = vmatprep.subr.mxu0 0.0
        %865 = vmatpush2.msra.mxu0 0.0
        %866 = vmatprep.subr.mxu0 0.0
        %867 = vmatpush2.msra.mxu0 0.0
        %868 = vmatprep.subr.mxu0 0.0
        %869 = vmatpush2.msra.mxu0 0.0
        %870 = vmatprep.subr.mxu0 0.0
        %871 = vmatpush2.msra.mxu0 0.0
        %872 = vmatprep.subr.mxu0 0.0
        %873 = vmatpush2.msra.mxu0 0.0
        %874 = vmatprep.subr.mxu0 0.0
        %875 = vmatpush2.msra.mxu0 0.0
        %876 = vmatprep.subr.mxu0 0.0
        %877 = vmatpush2.msra.mxu0 0.0
        %878 = vmatprep.subr.mxu0 0.0
        %879 = vmatpush2.msra.mxu0 0.0
        %880 = vmatprep.subr.mxu0 0.0
        %881 = vmatpush2.msra.mxu0 0.0
        %882 = vmatprep.subr.mxu0 0.0
        %883 = vmatpush2.msra.mxu0 0.0
        %884 = vmatprep.subr.mxu0 0.0
        %885 = vmatpush2.msra.mxu0 0.0
        %886 = vmatprep.subr.mxu0 0.0
        %887 = vmatpush2.msra.mxu0 0.0
        %888 = vmatprep.subr.mxu0 0.0
        %889 = vmatpush2.msra.mxu0 0.0
        %890 = vmatprep.mubr.f32.mxu0 0.0
        %891 = vmatmul.mubr.f32.gmra.mxu0 %v581
        %v892 = vpop.f32.mrf.mxu0
        %v893 = vadd.f32 0.0, %v892
        %v894 = vpop.f32.mrf.mxu0
        %895 = vdwg.mxu0
        %v896 = vmul.f32 %v893, %v604
        %v897 = vsel %vm590, -inf, %v896
        %s898 = scalar_lea.vmem %s341, 24 [#allocation7]
        %899 = vst [vmem:[%s898] sm:$0xff] %v897
        %s900 = sand.u32 %s188, 1
        %s901 = scalar_lea.sflag [#allocation4], %s900
        %s902 = sand.u32 %s188, 1
        %s903 = smul.addr %s902, 32
        %s904 = scalar_lea.vmem [#allocation7], %s903
        // Predicated region
        $region49: #{tpu_custom_call.1} parent=39 // pred_check
          %p905 = pneg %p198
        $region50: #{tpu_custom_call.1} parent=39 // pred_check_branch
          %907 = sbr.rel (%p905) target = $region52
        $region51: #{tpu_custom_call.1} parent=39 // pred_region
          %s908 = smul.u32 4, %s29
          %s910 = ssub.s32 512, 512
          %911 = vsyncadd %s901, %s910
          %s912 = sadd.s32 %s30, %s908
          %s913 = smul.addr %s28, 4
          %s914 = sadd.s32 %s912, %s913
          %s915 = smul.addr %s914, 128
          %s916 = scalar_lea.hbm %s5, %s915
          %s917 = sshll.u32 %s904, 4
          %s918 = int_to_ptr.vmem [resolvable:$true] %s917
          %923 = dma.vmem_to_hbm [thread:$0]  %s918, 512, %s916, %s901, 128, 128, 8
        $region52: #{tpu_custom_call.1} parent=39 // pred_fallthru
          _
      $region40: #{tpu_custom_call.1} parent=5 // pred_fallthru
        _
      %p924 = scmp.le.s32.totalorder 2, %s18
      // Predicated region
      $region53: #{tpu_custom_call.1} parent=5 // pred_check
        %p925 = pneg %p924
      $region54: #{tpu_custom_call.1} parent=5 // pred_check_branch
        %927 = sbr.rel (%p925) target = $region56
      $region55: #{tpu_custom_call.1} parent=5 // pred_region
        %s928 = ssub.s32 %s18, 2
        // Predicated region
        $region57: #{tpu_custom_call.1} parent=55 // pred_check
          %p929 = pneg %p204
        $region58: #{tpu_custom_call.1} parent=55 // pred_check_branch
          %931 = sbr.rel (%p929) target = $region60
        $region59: #{tpu_custom_call.1} parent=55 // pred_region
          %s932 = sand.u32 %s189, 1
          %s933 = scalar_lea.sflag [#allocation4], %s932
          %s934 = sand.u32 %s189, 1
          %s935 = smul.addr %s934, 32
          %s936 = scalar_lea.vmem [#allocation7], %s935
          %937 = dma.done %s933, 512
        $region60: #{tpu_custom_call.1} parent=55 // pred_fallthru
          _
      $region56: #{tpu_custom_call.1} parent=5 // pred_fallthru
        _
    $region6: #{tpu_custom_call.1} parent=1 // loop_footer
      %s22 = sadd.s32 1, %s18
    $region7: #{tpu_custom_call.1} parent=1 // loop_footer_branch
      %17 = sbr.rel target = $region3
    $region8: #{tpu_custom_call.1} parent=1 // loop_exit
      _
    %938 = vsyncpa [#allocation3], 1
    %s939 = scalar_lea.sflag [#allocation3], 1
    %940 = vsyncpa %s939, 1
    %941 = vsyncpa [#allocation6], 1
    %942 = vsyncpa [#allocation4], 1
    %s943 = scalar_lea.sflag [#allocation4], 1
    %944 = vsyncpa %s943, 1

</llo_original>
